<compile_context>
chip_gen: v5e
topology: v5e:2x2
jax: 0.10.0
libtpu: 0.0.40
codegen_flags: <defaults>
</compile_context>

<pallas_src>
import math

import jax
import jax.numpy as jnp
from jax.experimental import pallas as pl
from jax.experimental.pallas import tpu as pltpu


# ---------------------------------------------------------------------------
# Small helpers
# ---------------------------------------------------------------------------
def _round_up(x: int, m: int) -> int:
    return ((x + m - 1) // m) * m


def _lcm(a: int, b: int) -> int:
    return a * b // math.gcd(a, b)


def _device_kind() -> str:
    try:
        return jax.devices()[0].device_kind.lower()
    except Exception:
        return ""


def _is_v5() -> bool:
    return "v5" in _device_kind()


def _vmem_limit_bytes() -> int:
    """Generation-aware scoped-VMEM limit (~80% of physical, capped)."""
    try:
        cap = int(pltpu.get_tpu_info().vmem_capacity_bytes)
        return max(32 * 1024 * 1024, min(int(cap * 0.8), 112 * 1024 * 1024))
    except Exception:
        return 64 * 1024 * 1024


def _resident_spec(block_shape, index_map):
    """Single-buffered BlockSpec for constant-index resident operands."""
    try:
        return pl.BlockSpec(block_shape, index_map, pipeline_mode=pl.Buffered(1))
    except Exception:  # older BlockSpec signature: fall back to default buffering
        return pl.BlockSpec(block_shape, index_map)


def _pad_to(a, shape, dtype):
    """Cast + zero-pad in one pass; no copy when already the right shape/dtype."""
    a = a.astype(dtype)
    if tuple(a.shape) == tuple(shape):
        return a
    out = jnp.zeros(shape, dtype)
    return out.at[tuple(slice(0, s) for s in a.shape)].set(a)


# ---------------------------------------------------------------------------
# Kernel bodies
# ---------------------------------------------------------------------------
def _xw_kernel(x_ref, w_ref, o_ref):
    """H_tile = x_tile @ W (row-tiled; computed once per forward)."""
    o_ref[...] = jnp.dot(
        x_ref[...], w_ref[...], preferred_element_type=jnp.float32
    ).astype(o_ref.dtype)


def _sh_kernel(s_ref, h_ref, b_ref, o_ref, acc_ref):
    """K-split: acc += S[i,k] @ H[k]; on last k: out = acc + b."""
    @pl.when(pl.program_id(1) == 0)
    def _():
        acc_ref[...] = jnp.zeros_like(acc_ref)

    acc_ref[...] += jnp.dot(
        s_ref[...], h_ref[...], preferred_element_type=jnp.float32
    )

    @pl.when(pl.program_id(1) == pl.num_programs(1) - 1)
    def _():
        o_ref[...] = (acc_ref[...] + b_ref[...]).astype(o_ref.dtype)


def _sxw_kernel(s_ref, x_ref, w_ref, b_ref, o_ref, acc_ref):
    """K-split: acc += S[i,k] @ x[k]; on last k: out = acc(f32) @ W + b.

    The (S @ x) intermediate stays in f32; only the large S matmul runs at the
    storage dtype (addresses the double-rounding concern from review).
    """
    @pl.when(pl.program_id(1) == 0)
    def _():
        acc_ref[...] = jnp.zeros_like(acc_ref)

    acc_ref[...] += jnp.dot(
        s_ref[...], x_ref[...], preferred_element_type=jnp.float32
    )

    @pl.when(pl.program_id(1) == pl.num_programs(1) - 1)
    def _():
        sxw = jnp.dot(
            acc_ref[...],
            w_ref[...].astype(jnp.float32),
            preferred_element_type=jnp.float32,
        )
        o_ref[...] = (sxw + b_ref[...]).astype(o_ref.dtype)


# ---------------------------------------------------------------------------
# Forward wrapper
# ---------------------------------------------------------------------------
def gcn_forward(S_norm, x, W, b, *, row_tile=None, k_tile=512,
                mxu_dtype=jnp.bfloat16):
    """S_norm: (N, N), x: (N, in_dim), W: (in_dim, out_dim), b: (out_dim,).

    mxu_dtype: storage/MXU operand dtype for S / x / W / H (bf16 default, f32
    accumulation).  Pass jnp.float32 for exact-parity mode.
    """
    N, in_dim = x.shape
    out_dim = W.shape[1]
    f32 = jnp.float32
    out_dtype = x.dtype
    storage_dtype = jnp.dtype(mxu_dtype)
    itemsize = storage_dtype.itemsize
    out_itemsize = jnp.dtype(out_dtype).itemsize

    # MXU-aligned tiling (256-wide MXU on v6e/v7x, 128 on v5e).
    align = 128 if _is_v5() else 256
    if row_tile is None:
        row_tile = 128 if _is_v5() else 256

    in_pad = _round_up(in_dim, 128)
    out_pad = _round_up(out_dim, 128)
    tm = min(_round_up(row_tile, align), _round_up(N, align))
    tk = min(_round_up(k_tile, align), _round_up(N, align))
    n_pad = _round_up(N, _lcm(tm, tk))
    grid = (n_pad // tm, n_pad // tk)

    # Single-pass cast (+ zero-pad only when needed).  Zero rows/cols leave the
    # valid region unchanged; padded output rows are sliced off below.
    S_p = _pad_to(S_norm, (n_pad, n_pad), storage_dtype)
    x_p = _pad_to(x, (n_pad, in_pad), storage_dtype)
    W_p = _pad_to(W, (in_pad, out_pad), storage_dtype)
    b_p = _pad_to(b.reshape(1, -1), (1, out_pad), f32)

    vmem_limit = _vmem_limit_bytes()
    cparams = pltpu.CompilerParams(
        dimension_semantics=("parallel", "arbitrary"),
        vmem_limit_bytes=vmem_limit,
    )

    # Reassociate only if it actually shrinks the N^2-wide matmul (padded widths).
    reassociate = in_pad > out_pad

    if reassociate:
        # H = x @ W computed once (row-tiled over nodes), stored at storage dtype.
        H_p = pl.pallas_call(
            _xw_kernel,
            out_shape=jax.ShapeDtypeStruct((n_pad, out_pad), storage_dtype),
            grid=(n_pad // tm,),
            in_specs=[
                pl.BlockSpec((tm, in_pad), lambda i: (i, 0)),
                _resident_spec((in_pad, out_pad), lambda i: (0, 0)),
            ],
            out_specs=pl.BlockSpec((tm, out_pad), lambda i: (i, 0)),
            compiler_params=pltpu.CompilerParams(
                dimension_semantics=("parallel",),
                vmem_limit_bytes=vmem_limit,
            ),
            cost_estimate=pl.CostEstimate(
                flops=2 * n_pad * in_pad * out_pad,
                transcendentals=0,
                bytes_accessed=itemsize
                * (n_pad * in_pad + in_pad * out_pad + n_pad * out_pad),
            ),
        )(x_p, W_p)

        kernel = _sh_kernel
        operands = (S_p, H_p, b_p)
        in_specs = [
            pl.BlockSpec((tm, tk), lambda i, k: (i, k)),          # S tile (streamed)
            pl.BlockSpec((tk, out_pad), lambda i, k: (k, 0)),     # H tile (streamed)
            _resident_spec((1, out_pad), lambda i, k: (0, 0)),    # bias (resident)
        ]
        scratch = [pltpu.VMEM((tm, out_pad), f32)]
        flops = 2 * n_pad * n_pad * out_pad
        bytes_accessed = (
            itemsize * (n_pad * n_pad + n_pad * out_pad)
            + 4 * out_pad
            + out_itemsize * n_pad * out_pad
        )
    else:
        kernel = _sxw_kernel
        operands = (S_p, x_p, W_p, b_p)
        in_specs = [
            pl.BlockSpec((tm, tk), lambda i, k: (i, k)),          # S tile (streamed)
            pl.BlockSpec((tk, in_pad), lambda i, k: (k, 0)),      # x tile (streamed)
            _resident_spec((in_pad, out_pad), lambda i, k: (0, 0)),  # W (resident)
            _resident_spec((1, out_pad), lambda i, k: (0, 0)),       # bias (resident)
        ]
        scratch = [pltpu.VMEM((tm, in_pad), f32)]
        flops = 2 * n_pad * n_pad * in_pad + 2 * n_pad * in_pad * out_pad
        bytes_accessed = (
            itemsize * (n_pad * n_pad + n_pad * in_pad + in_pad * out_pad)
            + 4 * out_pad
            + out_itemsize * n_pad * out_pad
        )

    out_p = pl.pallas_call(
        kernel,
        out_shape=jax.ShapeDtypeStruct((n_pad, out_pad), out_dtype),
        grid=grid,
        in_specs=in_specs,
        out_specs=pl.BlockSpec((tm, out_pad), lambda i, k: (i, 0)),
        scratch_shapes=scratch,
        compiler_params=cparams,
        cost_estimate=pl.CostEstimate(
            flops=flops, transcendentals=0, bytes_accessed=int(bytes_accessed)
        ),
    )(*operands)

    return out_p[:N, :out_dim]


# ---------------------------------------------------------------------------
# Parameter / adjacency setup (mirrors StandardGCNNLayer.__init__, plain JAX)
# ---------------------------------------------------------------------------
def normalize_adjacency(S):
    """S <- D^{-1/2} (S + I) D^{-1/2}, matching the PyTorch module."""
    N = S.shape[0]
    S = S + jnp.eye(N, dtype=S.dtype)
    d = S.sum(axis=1)
    eps = 1e-6
    d_inv_sqrt = 1.0 / jnp.sqrt(d + eps)
    D_inv = jnp.diag(d_inv_sqrt)
    return D_inv @ S @ D_inv


def init_params(key, in_dim, out_dim, dtype=jnp.float32):
    """Synthetic init matching shapes/ranges of the module.

    W: kaiming_uniform_ on (in_dim, out_dim) (PyTorch fan_in = out_dim).
    b: uniform(-std, std) with std = 1 / (in_dim * out_dim).
    """
    k_w, k_b = jax.random.split(key)
    w_bound = jnp.sqrt(2.0) * jnp.sqrt(3.0 / out_dim)
    W = jax.random.uniform(k_w, (in_dim, out_dim), dtype, -w_bound, w_bound)
    b_bound = 1.0 / (in_dim * out_dim)
    b = jax.random.uniform(k_b, (out_dim,), dtype, -b_bound, b_bound)
    return W, b


# ---------------------------------------------------------------------------
# Demo / self-check
# ---------------------------------------------------------------------------
if __name__ == "__main__":
    key = jax.random.PRNGKey(0)
    k_s, k_x1, k_p1, k_x2, k_p2 = jax.random.split(key, 5)

    N = 16
    dtype = jnp.float32

    # Synthetic symmetric adjacency (no self-loops; the module adds identity).
    A = (jax.random.uniform(k_s, (N, N), dtype) > 0.7).astype(dtype)
    A = jnp.maximum(A, A.T)
    A = A * (1.0 - jnp.eye(N, dtype=dtype))
    S_norm = normalize_adjacency(A)

    # ---- config 1: in_pad == out_pad -> fused (S @ x) @ W path -------------
    in_dim, out_dim = 32, 64
    W1, b1 = init_params(k_p1, in_dim, out_dim, dtype)
    x1 = jax.random.normal(k_x1, (N, in_dim), dtype)
    ref1 = S_norm @ x1 @ W1 + b1[None, :]

    out1_f32 = jax.block_until_ready(
        gcn_forward(S_norm, x1, W1, b1, mxu_dtype=jnp.float32))
    assert out1_f32.shape == (N, out_dim)
    assert jnp.allclose(out1_f32, ref1, atol=1e-4, rtol=1e-4), "f32 (S@x)@W mismatch"

    out1_bf16 = jax.block_until_ready(gcn_forward(S_norm, x1, W1, b1))  # bf16 default
    assert jnp.allclose(out1_bf16, ref1, atol=1e-1, rtol=5e-2), "bf16 (S@x)@W mismatch"

    # ---- config 2: in_pad > out_pad -> reassociated S @ (x @ W) path -------
    in_dim2, out_dim2 = 256, 64
    W2, b2 = init_params(k_p2, in_dim2, out_dim2, dtype)
    x2 = jax.random.normal(k_x2, (N, in_dim2), dtype)
    ref2 = S_norm @ x2 @ W2 + b2[None, :]

    out2_f32 = jax.block_until_ready(
        gcn_forward(S_norm, x2, W2, b2, mxu_dtype=jnp.float32))
    assert out2_f32.shape == (N, out_dim2)
    assert jnp.allclose(out2_f32, ref2, atol=1e-4, rtol=1e-4), "f32 S@(x@W) mismatch"

    out2_bf16 = jax.block_until_ready(gcn_forward(S_norm, x2, W2, b2))  # bf16 default
    assert jnp.allclose(out2_bf16, ref2, atol=1e-1, rtol=5e-2), "bf16 S@(x@W) mismatch"

    print("KERNEL_OK")
</pallas_src>

<mosaic_0001>
module attributes {stable_mosaic.version = 11 : i64} {
  func.func @_sxw_kernel(%arg0: i32, %arg1: i32, %arg2: memref<256x256xf32, #tpu.memory_space<vmem>>, %arg3: memref<256x128xf32, #tpu.memory_space<vmem>>, %arg4: memref<128x128xf32, #tpu.memory_space<vmem>>, %arg5: memref<1x128xf32, #tpu.memory_space<vmem>>, %arg6: memref<256x128xf32, #tpu.memory_space<vmem>>, %arg7: memref<256x128xf32, #tpu.memory_space<vmem>>) attributes {dimension_semantics = [#tpu.dimension_semantics<parallel>, #tpu.dimension_semantics<arbitrary>], iteration_bounds = array<i64: 1, 1>, scalar_prefetch = 0 : i64, scratch_operands = 1 : i64, tpu.core_type = #tpu.core_type<tc>, window_params = [{transform_indices = @transform_0, window_bounds = array<i64: 256, 256>}, {transform_indices = @transform_1, window_bounds = array<i64: 256, 128>}, {pipeline_mode = #tpu.pipeline_mode<synchronous>, transform_indices = @transform_2, window_bounds = array<i64: 128, 128>}, {pipeline_mode = #tpu.pipeline_mode<synchronous>, transform_indices = @transform_3, window_bounds = array<i64: 1, 128>}, {transform_indices = @transform_4, window_bounds = array<i64: 256, 128>}]} {
    %c0_i32 = arith.constant 0 : i32
    %0 = arith.cmpi eq, %arg1, %c0_i32 : i32
    %1 = arith.extui %0 : i1 to i32
    %c0_i32_0 = arith.constant 0 : i32
    %2 = arith.cmpi ne, %1, %c0_i32_0 : i32
    scf.if %2 {
      %cst_10 = arith.constant 0.000000e+00 : f32
      %12 = vector.broadcast %cst_10 : f32 to vector<256x128xf32>
      %c0_11 = arith.constant 0 : index
      %c0_12 = arith.constant 0 : index
      %13 = vector.load %arg7[%c0_11, %c0_12] : memref<256x128xf32, #tpu.memory_space<vmem>>, vector<256x128xf32>
      tpu.vector_store %arg7[%c0_11, %c0_12], %12 {strides = array<i32>} : memref<256x128xf32, #tpu.memory_space<vmem>>, vector<256x128xf32>,
    } else {
    }
    %c0 = arith.constant 0 : index
    %c0_1 = arith.constant 0 : index
    %3 = vector.load %arg7[%c0, %c0_1] : memref<256x128xf32, #tpu.memory_space<vmem>>, vector<256x128xf32>
    %c0_2 = arith.constant 0 : index
    %c0_3 = arith.constant 0 : index
    %4 = vector.load %arg2[%c0_2, %c0_3] : memref<256x256xf32, #tpu.memory_space<vmem>>, vector<256x256xf32>
    %c0_4 = arith.constant 0 : index
    %c0_5 = arith.constant 0 : index
    %5 = vector.load %arg3[%c0_4, %c0_5] : memref<256x128xf32, #tpu.memory_space<vmem>>, vector<256x128xf32>
    %cst = arith.constant dense<0.000000e+00> : vector<256x128xf32>
    %6 = tpu.matmul %4, %5, %cst {dimension_numbers = #tpu.dot_dimension_numbers<[1], [0], [0], [1], [0, 0, 1, 1], [], []>} : vector<256x256xf32>, vector<256x128xf32>, vector<256x128xf32> -> vector<256x128xf32>
    %7 = arith.addf %3, %6 : vector<256x128xf32>
    %c0_6 = arith.constant 0 : index
    %c0_7 = arith.constant 0 : index
    %8 = vector.load %arg7[%c0_6, %c0_7] : memref<256x128xf32, #tpu.memory_space<vmem>>, vector<256x128xf32>
    tpu.vector_store %arg7[%c0_6, %c0_7], %7 {strides = array<i32>} : memref<256x128xf32, #tpu.memory_space<vmem>>, vector<256x128xf32>,
    %c0_i32_8 = arith.constant 0 : i32
    %9 = arith.cmpi eq, %arg1, %c0_i32_8 : i32
    %10 = arith.extui %9 : i1 to i32
    %c0_i32_9 = arith.constant 0 : i32
    %11 = arith.cmpi ne, %10, %c0_i32_9 : i32
    scf.if %11 {
      %c0_10 = arith.constant 0 : index
      %c0_11 = arith.constant 0 : index
      %12 = vector.load %arg7[%c0_10, %c0_11] : memref<256x128xf32, #tpu.memory_space<vmem>>, vector<256x128xf32>
      %c0_12 = arith.constant 0 : index
      %c0_13 = arith.constant 0 : index
      %13 = vector.load %arg4[%c0_12, %c0_13] : memref<128x128xf32, #tpu.memory_space<vmem>>, vector<128x128xf32>
      %cst_14 = arith.constant dense<0.000000e+00> : vector<256x128xf32>
      %14 = tpu.matmul %12, %13, %cst_14 {dimension_numbers = #tpu.dot_dimension_numbers<[1], [0], [0], [1], [0, 0, 1, 1], [], []>} : vector<256x128xf32>, vector<128x128xf32>, vector<256x128xf32> -> vector<256x128xf32>
      %c0_15 = arith.constant 0 : index
      %c0_16 = arith.constant 0 : index
      %15 = vector.load %arg5[%c0_15, %c0_16] : memref<1x128xf32, #tpu.memory_space<vmem>>, vector<1x128xf32>
      %16 = vector.broadcast %15 : vector<1x128xf32> to vector<256x128xf32>
      %17 = arith.addf %14, %16 : vector<256x128xf32>
      %c0_17 = arith.constant 0 : index
      %c0_18 = arith.constant 0 : index
      %18 = vector.load %arg6[%c0_17, %c0_18] : memref<256x128xf32, #tpu.memory_space<vmem>>, vector<256x128xf32>
      tpu.vector_store %arg6[%c0_17, %c0_18], %17 {strides = array<i32>} : memref<256x128xf32, #tpu.memory_space<vmem>>, vector<256x128xf32>,
    } else {
    }
    return
  }
  func.func @transform_0(%arg0: i32, %arg1: i32) -> (i32, i32) {
    %c0_i32 = arith.constant 0 : i32
    return %arg0, %arg1 : i32, i32
  }
  func.func @transform_1(%arg0: i32, %arg1: i32) -> (i32, i32) {
    %c0_i32 = arith.constant 0 : i32
    %c0_i32_0 = arith.constant 0 : i32
    return %arg1, %c0_i32 : i32, i32
  }
  func.func @transform_2(%arg0: i32, %arg1: i32) -> (i32, i32) {
    %c0_i32 = arith.constant 0 : i32
    %c0_i32_0 = arith.constant 0 : i32
    %c0_i32_1 = arith.constant 0 : i32
    return %c0_i32, %c0_i32_0 : i32, i32
  }
  func.func @transform_3(%arg0: i32, %arg1: i32) -> (i32, i32) {
    %c0_i32 = arith.constant 0 : i32
    %c0_i32_0 = arith.constant 0 : i32
    %c0_i32_1 = arith.constant 0 : i32
    return %c0_i32, %c0_i32_0 : i32, i32
  }
  func.func @transform_4(%arg0: i32, %arg1: i32) -> (i32, i32) {
    %c0_i32 = arith.constant 0 : i32
    %c0_i32_0 = arith.constant 0 : i32
    return %arg0, %c0_i32 : i32, i32
  }
}

</mosaic_0001>

<llo_original>
// kernel: tpu_custom_call.1
$region0: #{tpu_custom_call.1}
  #allocation0 [shape = 'u32[]', space=smem, size = 0x4, offset = 0x4, fixed_abs, tag = 'smem constant byte address 0x4 - core index']
  #allocation1 [shape = 'u32[72,128]{1,0:T(1,128)}', space=vmem, size = 0x9000, scoped, tag = 'internal scratch']
  #allocation2 [shape = 'f32[256,128]{1,0:T(8,128)}', space=vmem, size = 0x20000, scoped, tag = 'scratch operand']
  %s0 = inlined_call_operand.hbm [shape: f32[256,256], index: 0, kind: input, shape index: {}]
  %s1 = inlined_call_operand.hbm [shape: f32[256,128], index: 1, kind: input, shape index: {}]
  %s2 = inlined_call_operand.hbm [shape: f32[128,128], index: 2, kind: input, shape index: {}]
  %s3 = inlined_call_operand.vmem [shape: f32[1,128], index: 3, kind: input, shape index: {}]
  %s4 = inlined_call_operand.hbm [shape: f32[256,128], index: 4, kind: output, shape index: {}]
  %s5 = sld [smem:[#allocation0]]
  $region46: #{tpu_custom_call.1} parent=0
    _
  %s7 = ssub.s32 1, %s5
  %s8 = scalar_select 0, %s7, %s5
  $region1: #{tpu_custom_call.1} parent=0
    #allocation3 [shape = 'u8[262144]{0}', space=vmem, size = 0x40000, scoped, tag = 'input window, operand 0, single buffered']
    #allocation4 [shape = 's32[1]{0}', space=sflag, size = 0x4, scoped, tag = 'scoped memory for tpu_custom_call.1']
    #allocation5 [shape = 's32[1]{0}', space=sflag, size = 0x4, scoped, tag = 'scoped memory for tpu_custom_call.1']
    #allocation6 [shape = 'u8[131072]{0}', space=vmem, size = 0x20000, scoped, tag = 'input window, operand 1, single buffered']
    #allocation7 [shape = 's32[1]{0}', space=sflag, size = 0x4, scoped, tag = 'scoped memory for tpu_custom_call.1']
    #allocation8 [shape = 'u8[65536]{0}', space=vmem, size = 0x10000, scoped, tag = 'input window, operand 2, single buffered']
    #allocation9 [shape = 'u8[131072]{0}', space=vmem, size = 0x20000, scoped, tag = 'output window, operand 0, single buffered']
    %9 = vsyncpa [#allocation4], 0
    %10 = vsyncpa [#allocation7], 0
    %11 = vsyncpa [#allocation5], 0
    // Predicated region
    $region2: #{tpu_custom_call.1} parent=1 // pred_check
      _
    $region3: #{tpu_custom_call.1} parent=1 // pred_check_branch
      %13 = sbr.rel (0) target = $region5
    $region4: #{tpu_custom_call.1} parent=1 // pred_region
      %15 = vsyncadd [#allocation4], 0
      %s16 = sshll.u32 %s0, 4
      %s17 = int_to_ptr.hbm [resolvable:$true] %s16
      %s18 = sshll.u32 [#allocation3], 4
      %s19 = int_to_ptr.vmem [resolvable:$true] %s18
      %24 = dma.hbm_to_vmem [thread:$0]  %s17, 8192, %s19, [#allocation4], 256, 256, 16
    $region5: #{tpu_custom_call.1} parent=1 // pred_fallthru
      _
    // Predicated region
    $region6: #{tpu_custom_call.1} parent=1 // pred_check
      _
    $region7: #{tpu_custom_call.1} parent=1 // pred_check_branch
      %26 = sbr.rel (0) target = $region9
    $region8: #{tpu_custom_call.1} parent=1 // pred_region
      %28 = vsyncadd [#allocation7], 0
      %s29 = sshll.u32 %s1, 4
      %s30 = int_to_ptr.hbm [resolvable:$true] %s29
      %s31 = sshll.u32 [#allocation6], 4
      %s32 = int_to_ptr.vmem [resolvable:$true] %s31
      %37 = dma.hbm_to_vmem [thread:$0]  %s30, 4096, %s32, [#allocation7], 128, 128, 8
    $region9: #{tpu_custom_call.1} parent=1 // pred_fallthru
      _
    // Predicated region
    $region10: #{tpu_custom_call.1} parent=1 // pred_check
      _
    $region11: #{tpu_custom_call.1} parent=1 // pred_check_branch
      %39 = sbr.rel (0) target = $region13
    $region12: #{tpu_custom_call.1} parent=1 // pred_region
      %41 = vsyncadd [#allocation7], 0
      %s42 = sshll.u32 %s2, 4
      %s43 = int_to_ptr.hbm [resolvable:$true] %s42
      %s44 = sshll.u32 [#allocation8], 4
      %s45 = int_to_ptr.vmem [resolvable:$true] %s44
      %50 = dma.hbm_to_vmem [thread:$0]  %s43, 2048, %s45, [#allocation7], 128, 128, 8
    $region13: #{tpu_custom_call.1} parent=1 // pred_fallthru
      _
    // Predicated region
    $region14: #{tpu_custom_call.1} parent=1 // pred_check
      _
    $region15: #{tpu_custom_call.1} parent=1 // pred_check_branch
      %52 = sbr.rel (0) target = $region17
    $region16: #{tpu_custom_call.1} parent=1 // pred_region
      _
    $region17: #{tpu_custom_call.1} parent=1 // pred_fallthru
      _
    // Predicated region
    $region18: #{tpu_custom_call.1} parent=1 // pred_check
      _
    $region19: #{tpu_custom_call.1} parent=1 // pred_check_branch
      %54 = sbr.rel (0) target = $region21
    $region20: #{tpu_custom_call.1} parent=1 // pred_region
      %56 = dma.done [#allocation4], 8192
    $region21: #{tpu_custom_call.1} parent=1 // pred_fallthru
      _
    // Predicated region
    $region22: #{tpu_custom_call.1} parent=1 // pred_check
      _
    $region23: #{tpu_custom_call.1} parent=1 // pred_check_branch
      %58 = sbr.rel (0) target = $region25
    $region24: #{tpu_custom_call.1} parent=1 // pred_region
      %60 = dma.done [#allocation7], 4096
    $region25: #{tpu_custom_call.1} parent=1 // pred_fallthru
      _
    // Predicated region
    $region26: #{tpu_custom_call.1} parent=1 // pred_check
      _
    $region27: #{tpu_custom_call.1} parent=1 // pred_check_branch
      %62 = sbr.rel (0) target = $region29
    $region28: #{tpu_custom_call.1} parent=1 // pred_region
      %64 = dma.done [#allocation7], 2048
    $region29: #{tpu_custom_call.1} parent=1 // pred_fallthru
      _
    %p65 = scmp.eq.s32.totalorder 0, 0
    // Predicated region
    $region30: #{tpu_custom_call.1} parent=1 // pred_check
      %p66 = pneg %p65
    $region31: #{tpu_custom_call.1} parent=1 // pred_check_branch
      %68 = sbr.rel (%p66) target = $region33
    $region32: #{tpu_custom_call.1} parent=1 // pred_region
      %69 = vst [vmem:[#allocation2] sm:$0xff] 0.0
      %70 = vst [vmem:[#allocation2 + $0x8] sm:$0xff] 0.0
      %71 = vst [vmem:[#allocation2 + $0x10] sm:$0xff] 0.0
      %72 = vst [vmem:[#allocation2 + $0x18] sm:$0xff] 0.0
      %73 = vst [vmem:[#allocation2 + $0x20] sm:$0xff] 0.0
      %74 = vst [vmem:[#allocation2 + $0x28] sm:$0xff] 0.0
      %75 = vst [vmem:[#allocation2 + $0x30] sm:$0xff] 0.0
      %76 = vst [vmem:[#allocation2 + $0x38] sm:$0xff] 0.0
      %77 = vst [vmem:[#allocation2 + $0x40] sm:$0xff] 0.0
      %78 = vst [vmem:[#allocation2 + $0x48] sm:$0xff] 0.0
      %79 = vst [vmem:[#allocation2 + $0x50] sm:$0xff] 0.0
      %80 = vst [vmem:[#allocation2 + $0x58] sm:$0xff] 0.0
      %81 = vst [vmem:[#allocation2 + $0x60] sm:$0xff] 0.0
      %82 = vst [vmem:[#allocation2 + $0x68] sm:$0xff] 0.0
      %83 = vst [vmem:[#allocation2 + $0x70] sm:$0xff] 0.0
      %84 = vst [vmem:[#allocation2 + $0x78] sm:$0xff] 0.0
      %85 = vst [vmem:[#allocation2 + $0x80] sm:$0xff] 0.0
      %86 = vst [vmem:[#allocation2 + $0x88] sm:$0xff] 0.0
      %87 = vst [vmem:[#allocation2 + $0x90] sm:$0xff] 0.0
      %88 = vst [vmem:[#allocation2 + $0x98] sm:$0xff] 0.0
      %89 = vst [vmem:[#allocation2 + $0xa0] sm:$0xff] 0.0
      %90 = vst [vmem:[#allocation2 + $0xa8] sm:$0xff] 0.0
      %91 = vst [vmem:[#allocation2 + $0xb0] sm:$0xff] 0.0
      %92 = vst [vmem:[#allocation2 + $0xb8] sm:$0xff] 0.0
      %93 = vst [vmem:[#allocation2 + $0xc0] sm:$0xff] 0.0
      %94 = vst [vmem:[#allocation2 + $0xc8] sm:$0xff] 0.0
      %95 = vst [vmem:[#allocation2 + $0xd0] sm:$0xff] 0.0
      %96 = vst [vmem:[#allocation2 + $0xd8] sm:$0xff] 0.0
      %97 = vst [vmem:[#allocation2 + $0xe0] sm:$0xff] 0.0
      %98 = vst [vmem:[#allocation2 + $0xe8] sm:$0xff] 0.0
      %99 = vst [vmem:[#allocation2 + $0xf0] sm:$0xff] 0.0
      %100 = vst [vmem:[#allocation2 + $0xf8] sm:$0xff] 0.0
    $region33: #{tpu_custom_call.1} parent=1 // pred_fallthru
      _
    %v101 = vld [vmem:[#allocation2] sm:$0xff]
    %v102 = vld [vmem:[#allocation2 + $0x8] sm:$0xff]
    %v103 = vld [vmem:[#allocation2 + $0x10] sm:$0xff]
    %v104 = vld [vmem:[#allocation2 + $0x18] sm:$0xff]
    %v105 = vld [vmem:[#allocation2 + $0x20] sm:$0xff]
    %v106 = vld [vmem:[#allocation2 + $0x28] sm:$0xff]
    %v107 = vld [vmem:[#allocation2 + $0x30] sm:$0xff]
    %v108 = vld [vmem:[#allocation2 + $0x38] sm:$0xff]
    %v109 = vld [vmem:[#allocation2 + $0x40] sm:$0xff]
    %v110 = vld [vmem:[#allocation2 + $0x48] sm:$0xff]
    %v111 = vld [vmem:[#allocation2 + $0x50] sm:$0xff]
    %v112 = vld [vmem:[#allocation2 + $0x58] sm:$0xff]
    %v113 = vld [vmem:[#allocation2 + $0x60] sm:$0xff]
    %v114 = vld [vmem:[#allocation2 + $0x68] sm:$0xff]
    %v115 = vld [vmem:[#allocation2 + $0x70] sm:$0xff]
    %v116 = vld [vmem:[#allocation2 + $0x78] sm:$0xff]
    %v117 = vld [vmem:[#allocation2 + $0x80] sm:$0xff]
    %v118 = vld [vmem:[#allocation2 + $0x88] sm:$0xff]
    %v119 = vld [vmem:[#allocation2 + $0x90] sm:$0xff]
    %v120 = vld [vmem:[#allocation2 + $0x98] sm:$0xff]
    %v121 = vld [vmem:[#allocation2 + $0xa0] sm:$0xff]
    %v122 = vld [vmem:[#allocation2 + $0xa8] sm:$0xff]
    %v123 = vld [vmem:[#allocation2 + $0xb0] sm:$0xff]
    %v124 = vld [vmem:[#allocation2 + $0xb8] sm:$0xff]
    %v125 = vld [vmem:[#allocation2 + $0xc0] sm:$0xff]
    %v126 = vld [vmem:[#allocation2 + $0xc8] sm:$0xff]
    %v127 = vld [vmem:[#allocation2 + $0xd0] sm:$0xff]
    %v128 = vld [vmem:[#allocation2 + $0xd8] sm:$0xff]
    %v129 = vld [vmem:[#allocation2 + $0xe0] sm:$0xff]
    %v130 = vld [vmem:[#allocation2 + $0xe8] sm:$0xff]
    %v131 = vld [vmem:[#allocation2 + $0xf0] sm:$0xff]
    %v132 = vld [vmem:[#allocation2 + $0xf8] sm:$0xff]
    %v133 = vld [vmem:[#allocation3] sm:$0xff]
    %v134 = vld [vmem:[#allocation3 + $0x8] sm:$0xff]
    %v135 = vld [vmem:[#allocation3 + $0x10] sm:$0xff]
    %v136 = vld [vmem:[#allocation3 + $0x18] sm:$0xff]
    %v137 = vld [vmem:[#allocation3 + $0x20] sm:$0xff]
    %v138 = vld [vmem:[#allocation3 + $0x28] sm:$0xff]
    %v139 = vld [vmem:[#allocation3 + $0x30] sm:$0xff]
    %v140 = vld [vmem:[#allocation3 + $0x38] sm:$0xff]
    %v141 = vld [vmem:[#allocation3 + $0x40] sm:$0xff]
    %v142 = vld [vmem:[#allocation3 + $0x48] sm:$0xff]
    %v143 = vld [vmem:[#allocation3 + $0x50] sm:$0xff]
    %v144 = vld [vmem:[#allocation3 + $0x58] sm:$0xff]
    %v145 = vld [vmem:[#allocation3 + $0x60] sm:$0xff]
    %v146 = vld [vmem:[#allocation3 + $0x68] sm:$0xff]
    %v147 = vld [vmem:[#allocation3 + $0x70] sm:$0xff]
    %v148 = vld [vmem:[#allocation3 + $0x78] sm:$0xff]
    %v149 = vld [vmem:[#allocation3 + $0x80] sm:$0xff]
    %v150 = vld [vmem:[#allocation3 + $0x88] sm:$0xff]
    %v151 = vld [vmem:[#allocation3 + $0x90] sm:$0xff]
    %v152 = vld [vmem:[#allocation3 + $0x98] sm:$0xff]
    %v153 = vld [vmem:[#allocation3 + $0xa0] sm:$0xff]
    %v154 = vld [vmem:[#allocation3 + $0xa8] sm:$0xff]
    %v155 = vld [vmem:[#allocation3 + $0xb0] sm:$0xff]
    %v156 = vld [vmem:[#allocation3 + $0xb8] sm:$0xff]
    %v157 = vld [vmem:[#allocation3 + $0xc0] sm:$0xff]
    %v158 = vld [vmem:[#allocation3 + $0xc8] sm:$0xff]
    %v159 = vld [vmem:[#allocation3 + $0xd0] sm:$0xff]
    %v160 = vld [vmem:[#allocation3 + $0xd8] sm:$0xff]
    %v161 = vld [vmem:[#allocation3 + $0xe0] sm:$0xff]
    %v162 = vld [vmem:[#allocation3 + $0xe8] sm:$0xff]
    %v163 = vld [vmem:[#allocation3 + $0xf0] sm:$0xff]
    %v164 = vld [vmem:[#allocation3 + $0xf8] sm:$0xff]
    %v165 = vld [vmem:[#allocation3 + $0x100] sm:$0xff]
    %v166 = vld [vmem:[#allocation3 + $0x108] sm:$0xff]
    %v167 = vld [vmem:[#allocation3 + $0x110] sm:$0xff]
    %v168 = vld [vmem:[#allocation3 + $0x118] sm:$0xff]
    %v169 = vld [vmem:[#allocation3 + $0x120] sm:$0xff]
    %v170 = vld [vmem:[#allocation3 + $0x128] sm:$0xff]
    %v171 = vld [vmem:[#allocation3 + $0x130] sm:$0xff]
    %v172 = vld [vmem:[#allocation3 + $0x138] sm:$0xff]
    %v173 = vld [vmem:[#allocation3 + $0x140] sm:$0xff]
    %v174 = vld [vmem:[#allocation3 + $0x148] sm:$0xff]
    %v175 = vld [vmem:[#allocation3 + $0x150] sm:$0xff]
    %v176 = vld [vmem:[#allocation3 + $0x158] sm:$0xff]
    %v177 = vld [vmem:[#allocation3 + $0x160] sm:$0xff]
    %v178 = vld [vmem:[#allocation3 + $0x168] sm:$0xff]
    %v179 = vld [vmem:[#allocation3 + $0x170] sm:$0xff]
    %v180 = vld [vmem:[#allocation3 + $0x178] sm:$0xff]
    %v181 = vld [vmem:[#allocation3 + $0x180] sm:$0xff]
    %v182 = vld [vmem:[#allocation3 + $0x188] sm:$0xff]
    %v183 = vld [vmem:[#allocation3 + $0x190] sm:$0xff]
    %v184 = vld [vmem:[#allocation3 + $0x198] sm:$0xff]
    %v185 = vld [vmem:[#allocation3 + $0x1a0] sm:$0xff]
    %v186 = vld [vmem:[#allocation3 + $0x1a8] sm:$0xff]
    %v187 = vld [vmem:[#allocation3 + $0x1b0] sm:$0xff]
    %v188 = vld [vmem:[#allocation3 + $0x1b8] sm:$0xff]
    %v189 = vld [vmem:[#allocation3 + $0x1c0] sm:$0xff]
    %v190 = vld [vmem:[#allocation3 + $0x1c8] sm:$0xff]
    %v191 = vld [vmem:[#allocation3 + $0x1d0] sm:$0xff]
    %v192 = vld [vmem:[#allocation3 + $0x1d8] sm:$0xff]
    %v193 = vld [vmem:[#allocation3 + $0x1e0] sm:$0xff]
    %v194 = vld [vmem:[#allocation3 + $0x1e8] sm:$0xff]
    %v195 = vld [vmem:[#allocation3 + $0x1f0] sm:$0xff]
    %v196 = vld [vmem:[#allocation3 + $0x1f8] sm:$0xff]
    %v197 = vld [vmem:[#allocation6] sm:$0xff]
    %v198 = vld [vmem:[#allocation6 + $0x8] sm:$0xff]
    %v199 = vld [vmem:[#allocation6 + $0x10] sm:$0xff]
    %v200 = vld [vmem:[#allocation6 + $0x18] sm:$0xff]
    %v201 = vld [vmem:[#allocation6 + $0x20] sm:$0xff]
    %v202 = vld [vmem:[#allocation6 + $0x28] sm:$0xff]
    %v203 = vld [vmem:[#allocation6 + $0x30] sm:$0xff]
    %v204 = vld [vmem:[#allocation6 + $0x38] sm:$0xff]
    %v205 = vld [vmem:[#allocation6 + $0x40] sm:$0xff]
    %v206 = vld [vmem:[#allocation6 + $0x48] sm:$0xff]
    %v207 = vld [vmem:[#allocation6 + $0x50] sm:$0xff]
    %v208 = vld [vmem:[#allocation6 + $0x58] sm:$0xff]
    %v209 = vld [vmem:[#allocation6 + $0x60] sm:$0xff]
    %v210 = vld [vmem:[#allocation6 + $0x68] sm:$0xff]
    %v211 = vld [vmem:[#allocation6 + $0x70] sm:$0xff]
    %v212 = vld [vmem:[#allocation6 + $0x78] sm:$0xff]
    %v213 = vld [vmem:[#allocation6 + $0x80] sm:$0xff]
    %v214 = vld [vmem:[#allocation6 + $0x88] sm:$0xff]
    %v215 = vld [vmem:[#allocation6 + $0x90] sm:$0xff]
    %v216 = vld [vmem:[#allocation6 + $0x98] sm:$0xff]
    %v217 = vld [vmem:[#allocation6 + $0xa0] sm:$0xff]
    %v218 = vld [vmem:[#allocation6 + $0xa8] sm:$0xff]
    %v219 = vld [vmem:[#allocation6 + $0xb0] sm:$0xff]
    %v220 = vld [vmem:[#allocation6 + $0xb8] sm:$0xff]
    %v221 = vld [vmem:[#allocation6 + $0xc0] sm:$0xff]
    %v222 = vld [vmem:[#allocation6 + $0xc8] sm:$0xff]
    %v223 = vld [vmem:[#allocation6 + $0xd0] sm:$0xff]
    %v224 = vld [vmem:[#allocation6 + $0xd8] sm:$0xff]
    %v225 = vld [vmem:[#allocation6 + $0xe0] sm:$0xff]
    %v226 = vld [vmem:[#allocation6 + $0xe8] sm:$0xff]
    %v227 = vld [vmem:[#allocation6 + $0xf0] sm:$0xff]
    %v228 = vld [vmem:[#allocation6 + $0xf8] sm:$0xff]
    %229 = vmatpush.msra.mxu0 %v212
    %230 = vmatpush.msra.mxu0 %v211
    %231 = vmatpush.msra.mxu0 %v210
    %232 = vmatpush.msra.mxu0 %v209
    %233 = vmatpush.msra.mxu0 %v208
    %234 = vmatpush.msra.mxu0 %v207
    %235 = vmatpush.msra.mxu0 %v206
    %236 = vmatpush.msra.mxu0 %v205
    %237 = vmatpush.msra.mxu0 %v204
    %238 = vmatpush.msra.mxu0 %v203
    %239 = vmatpush.msra.mxu0 %v202
    %240 = vmatpush.msra.mxu0 %v201
    %241 = vmatpush.msra.mxu0 %v200
    %242 = vmatpush.msra.mxu0 %v199
    %243 = vmatpush.msra.mxu0 %v198
    %244 = vmatpush.msra.mxu0 %v197
    %245 = vmatmul.f32.gmra.mxu0 %v133
    %v246 = vpop.f32.mrf.mxu0
    %v247 = vadd.f32 0.0, %v246
    %248 = vmatmul.f32.gmra.mxu0 %v135
    %v249 = vpop.f32.mrf.mxu0
    %v250 = vadd.f32 0.0, %v249
    %251 = vmatmul.f32.gmra.mxu0 %v137
    %v252 = vpop.f32.mrf.mxu0
    %v253 = vadd.f32 0.0, %v252
    %254 = vmatmul.f32.gmra.mxu0 %v139
    %v255 = vpop.f32.mrf.mxu0
    %v256 = vadd.f32 0.0, %v255
    %257 = vmatmul.f32.gmra.mxu0 %v141
    %v258 = vpop.f32.mrf.mxu0
    %v259 = vadd.f32 0.0, %v258
    %260 = vmatmul.f32.gmra.mxu0 %v143
    %v261 = vpop.f32.mrf.mxu0
    %v262 = vadd.f32 0.0, %v261
    %263 = vmatmul.f32.gmra.mxu0 %v145
    %v264 = vpop.f32.mrf.mxu0
    %v265 = vadd.f32 0.0, %v264
    %266 = vmatmul.f32.gmra.mxu0 %v147
    %v267 = vpop.f32.mrf.mxu0
    %v268 = vadd.f32 0.0, %v267
    %269 = vmatmul.f32.gmra.mxu0 %v149
    %v270 = vpop.f32.mrf.mxu0
    %v271 = vadd.f32 0.0, %v270
    %272 = vmatmul.f32.gmra.mxu0 %v151
    %v273 = vpop.f32.mrf.mxu0
    %v274 = vadd.f32 0.0, %v273
    %275 = vmatmul.f32.gmra.mxu0 %v153
    %v276 = vpop.f32.mrf.mxu0
    %v277 = vadd.f32 0.0, %v276
    %278 = vmatmul.f32.gmra.mxu0 %v155
    %v279 = vpop.f32.mrf.mxu0
    %v280 = vadd.f32 0.0, %v279
    %281 = vmatmul.f32.gmra.mxu0 %v157
    %v282 = vpop.f32.mrf.mxu0
    %v283 = vadd.f32 0.0, %v282
    %284 = vmatmul.f32.gmra.mxu0 %v159
    %v285 = vpop.f32.mrf.mxu0
    %v286 = vadd.f32 0.0, %v285
    %287 = vmatmul.f32.gmra.mxu0 %v161
    %v288 = vpop.f32.mrf.mxu0
    %v289 = vadd.f32 0.0, %v288
    %290 = vmatmul.f32.gmra.mxu0 %v163
    %v291 = vpop.f32.mrf.mxu0
    %v292 = vadd.f32 0.0, %v291
    %293 = vmatmul.f32.gmra.mxu0 %v165
    %v294 = vpop.f32.mrf.mxu0
    %v295 = vadd.f32 0.0, %v294
    %296 = vmatmul.f32.gmra.mxu0 %v167
    %v297 = vpop.f32.mrf.mxu0
    %v298 = vadd.f32 0.0, %v297
    %299 = vmatmul.f32.gmra.mxu0 %v169
    %v300 = vpop.f32.mrf.mxu0
    %v301 = vadd.f32 0.0, %v300
    %302 = vmatmul.f32.gmra.mxu0 %v171
    %v303 = vpop.f32.mrf.mxu0
    %v304 = vadd.f32 0.0, %v303
    %305 = vmatmul.f32.gmra.mxu0 %v173
    %v306 = vpop.f32.mrf.mxu0
    %v307 = vadd.f32 0.0, %v306
    %308 = vmatmul.f32.gmra.mxu0 %v175
    %v309 = vpop.f32.mrf.mxu0
    %v310 = vadd.f32 0.0, %v309
    %311 = vmatmul.f32.gmra.mxu0 %v177
    %v312 = vpop.f32.mrf.mxu0
    %v313 = vadd.f32 0.0, %v312
    %314 = vmatmul.f32.gmra.mxu0 %v179
    %v315 = vpop.f32.mrf.mxu0
    %v316 = vadd.f32 0.0, %v315
    %317 = vmatmul.f32.gmra.mxu0 %v181
    %v318 = vpop.f32.mrf.mxu0
    %v319 = vadd.f32 0.0, %v318
    %320 = vmatmul.f32.gmra.mxu0 %v183
    %v321 = vpop.f32.mrf.mxu0
    %v322 = vadd.f32 0.0, %v321
    %323 = vmatmul.f32.gmra.mxu0 %v185
    %v324 = vpop.f32.mrf.mxu0
    %v325 = vadd.f32 0.0, %v324
    %326 = vmatmul.f32.gmra.mxu0 %v187
    %v327 = vpop.f32.mrf.mxu0
    %v328 = vadd.f32 0.0, %v327
    %329 = vmatmul.f32.gmra.mxu0 %v189
    %v330 = vpop.f32.mrf.mxu0
    %v331 = vadd.f32 0.0, %v330
    %332 = vmatmul.f32.gmra.mxu0 %v191
    %v333 = vpop.f32.mrf.mxu0
    %v334 = vadd.f32 0.0, %v333
    %335 = vmatmul.f32.gmra.mxu0 %v193
    %v336 = vpop.f32.mrf.mxu0
    %v337 = vadd.f32 0.0, %v336
    %338 = vmatmul.f32.gmra.mxu0 %v195
    %v339 = vpop.f32.mrf.mxu0
    %v340 = vadd.f32 0.0, %v339
    %341 = vdwg.mxu0
    %342 = vmatpush.msra.mxu0 %v228
    %343 = vmatpush.msra.mxu0 %v227
    %344 = vmatpush.msra.mxu0 %v226
    %345 = vmatpush.msra.mxu0 %v225
    %346 = vmatpush.msra.mxu0 %v224
    %347 = vmatpush.msra.mxu0 %v223
    %348 = vmatpush.msra.mxu0 %v222
    %349 = vmatpush.msra.mxu0 %v221
    %350 = vmatpush.msra.mxu0 %v220
    %351 = vmatpush.msra.mxu0 %v219
    %352 = vmatpush.msra.mxu0 %v218
    %353 = vmatpush.msra.mxu0 %v217
    %354 = vmatpush.msra.mxu0 %v216
    %355 = vmatpush.msra.mxu0 %v215
    %356 = vmatpush.msra.mxu0 %v214
    %357 = vmatpush.msra.mxu0 %v213
    %358 = vmatmul.f32.gmra.mxu0 %v134
    %v359 = vpop.f32.mrf.mxu0
    %v360 = vadd.f32 %v247, %v359
    %361 = vmatmul.f32.gmra.mxu0 %v136
    %v362 = vpop.f32.mrf.mxu0
    %v363 = vadd.f32 %v250, %v362
    %364 = vmatmul.f32.gmra.mxu0 %v138
    %v365 = vpop.f32.mrf.mxu0
    %v366 = vadd.f32 %v253, %v365
    %367 = vmatmul.f32.gmra.mxu0 %v140
    %v368 = vpop.f32.mrf.mxu0
    %v369 = vadd.f32 %v256, %v368
    %370 = vmatmul.f32.gmra.mxu0 %v142
    %v371 = vpop.f32.mrf.mxu0
    %v372 = vadd.f32 %v259, %v371
    %373 = vmatmul.f32.gmra.mxu0 %v144
    %v374 = vpop.f32.mrf.mxu0
    %v375 = vadd.f32 %v262, %v374
    %376 = vmatmul.f32.gmra.mxu0 %v146
    %v377 = vpop.f32.mrf.mxu0
    %v378 = vadd.f32 %v265, %v377
    %379 = vmatmul.f32.gmra.mxu0 %v148
    %v380 = vpop.f32.mrf.mxu0
    %v381 = vadd.f32 %v268, %v380
    %382 = vmatmul.f32.gmra.mxu0 %v150
    %v383 = vpop.f32.mrf.mxu0
    %v384 = vadd.f32 %v271, %v383
    %385 = vmatmul.f32.gmra.mxu0 %v152
    %v386 = vpop.f32.mrf.mxu0
    %v387 = vadd.f32 %v274, %v386
    %388 = vmatmul.f32.gmra.mxu0 %v154
    %v389 = vpop.f32.mrf.mxu0
    %v390 = vadd.f32 %v277, %v389
    %391 = vmatmul.f32.gmra.mxu0 %v156
    %v392 = vpop.f32.mrf.mxu0
    %v393 = vadd.f32 %v280, %v392
    %394 = vmatmul.f32.gmra.mxu0 %v158
    %v395 = vpop.f32.mrf.mxu0
    %v396 = vadd.f32 %v283, %v395
    %397 = vmatmul.f32.gmra.mxu0 %v160
    %v398 = vpop.f32.mrf.mxu0
    %v399 = vadd.f32 %v286, %v398
    %400 = vmatmul.f32.gmra.mxu0 %v162
    %v401 = vpop.f32.mrf.mxu0
    %v402 = vadd.f32 %v289, %v401
    %403 = vmatmul.f32.gmra.mxu0 %v164
    %v404 = vpop.f32.mrf.mxu0
    %v405 = vadd.f32 %v292, %v404
    %406 = vmatmul.f32.gmra.mxu0 %v166
    %v407 = vpop.f32.mrf.mxu0
    %v408 = vadd.f32 %v295, %v407
    %409 = vmatmul.f32.gmra.mxu0 %v168
    %v410 = vpop.f32.mrf.mxu0
    %v411 = vadd.f32 %v298, %v410
    %412 = vmatmul.f32.gmra.mxu0 %v170
    %v413 = vpop.f32.mrf.mxu0
    %v414 = vadd.f32 %v301, %v413
    %415 = vmatmul.f32.gmra.mxu0 %v172
    %v416 = vpop.f32.mrf.mxu0
    %v417 = vadd.f32 %v304, %v416
    %418 = vmatmul.f32.gmra.mxu0 %v174
    %v419 = vpop.f32.mrf.mxu0
    %v420 = vadd.f32 %v307, %v419
    %421 = vmatmul.f32.gmra.mxu0 %v176
    %v422 = vpop.f32.mrf.mxu0
    %v423 = vadd.f32 %v310, %v422
    %424 = vmatmul.f32.gmra.mxu0 %v178
    %v425 = vpop.f32.mrf.mxu0
    %v426 = vadd.f32 %v313, %v425
    %427 = vmatmul.f32.gmra.mxu0 %v180
    %v428 = vpop.f32.mrf.mxu0
    %v429 = vadd.f32 %v316, %v428
    %430 = vmatmul.f32.gmra.mxu0 %v182
    %v431 = vpop.f32.mrf.mxu0
    %v432 = vadd.f32 %v319, %v431
    %433 = vmatmul.f32.gmra.mxu0 %v184
    %v434 = vpop.f32.mrf.mxu0
    %v435 = vadd.f32 %v322, %v434
    %436 = vmatmul.f32.gmra.mxu0 %v186
    %v437 = vpop.f32.mrf.mxu0
    %v438 = vadd.f32 %v325, %v437
    %439 = vmatmul.f32.gmra.mxu0 %v188
    %v440 = vpop.f32.mrf.mxu0
    %v441 = vadd.f32 %v328, %v440
    %442 = vmatmul.f32.gmra.mxu0 %v190
    %v443 = vpop.f32.mrf.mxu0
    %v444 = vadd.f32 %v331, %v443
    %445 = vmatmul.f32.gmra.mxu0 %v192
    %v446 = vpop.f32.mrf.mxu0
    %v447 = vadd.f32 %v334, %v446
    %448 = vmatmul.f32.gmra.mxu0 %v194
    %v449 = vpop.f32.mrf.mxu0
    %v450 = vadd.f32 %v337, %v449
    %451 = vmatmul.f32.gmra.mxu0 %v196
    %v452 = vpop.f32.mrf.mxu0
    %v453 = vadd.f32 %v340, %v452
    %454 = vdwg.mxu0
    %v455 = vadd.f32 %v101, %v360
    %v456 = vadd.f32 %v102, %v363
    %v457 = vadd.f32 %v103, %v366
    %v458 = vadd.f32 %v104, %v369
    %v459 = vadd.f32 %v105, %v372
    %v460 = vadd.f32 %v106, %v375
    %v461 = vadd.f32 %v107, %v378
    %v462 = vadd.f32 %v108, %v381
    %v463 = vadd.f32 %v109, %v384
    %v464 = vadd.f32 %v110, %v387
    %v465 = vadd.f32 %v111, %v390
    %v466 = vadd.f32 %v112, %v393
    %v467 = vadd.f32 %v113, %v396
    %v468 = vadd.f32 %v114, %v399
    %v469 = vadd.f32 %v115, %v402
    %v470 = vadd.f32 %v116, %v405
    %v471 = vadd.f32 %v117, %v408
    %v472 = vadd.f32 %v118, %v411
    %v473 = vadd.f32 %v119, %v414
    %v474 = vadd.f32 %v120, %v417
    %v475 = vadd.f32 %v121, %v420
    %v476 = vadd.f32 %v122, %v423
    %v477 = vadd.f32 %v123, %v426
    %v478 = vadd.f32 %v124, %v429
    %v479 = vadd.f32 %v125, %v432
    %v480 = vadd.f32 %v126, %v435
    %v481 = vadd.f32 %v127, %v438
    %v482 = vadd.f32 %v128, %v441
    %v483 = vadd.f32 %v129, %v444
    %v484 = vadd.f32 %v130, %v447
    %v485 = vadd.f32 %v131, %v450
    %v486 = vadd.f32 %v132, %v453
    %487 = vst [vmem:[#allocation2] sm:$0xff] %v455
    %488 = vst [vmem:[#allocation2 + $0x8] sm:$0xff] %v456
    %489 = vst [vmem:[#allocation2 + $0x10] sm:$0xff] %v457
    %490 = vst [vmem:[#allocation2 + $0x18] sm:$0xff] %v458
    %491 = vst [vmem:[#allocation2 + $0x20] sm:$0xff] %v459
    %492 = vst [vmem:[#allocation2 + $0x28] sm:$0xff] %v460
    %493 = vst [vmem:[#allocation2 + $0x30] sm:$0xff] %v461
    %494 = vst [vmem:[#allocation2 + $0x38] sm:$0xff] %v462
    %495 = vst [vmem:[#allocation2 + $0x40] sm:$0xff] %v463
    %496 = vst [vmem:[#allocation2 + $0x48] sm:$0xff] %v464
    %497 = vst [vmem:[#allocation2 + $0x50] sm:$0xff] %v465
    %498 = vst [vmem:[#allocation2 + $0x58] sm:$0xff] %v466
    %499 = vst [vmem:[#allocation2 + $0x60] sm:$0xff] %v467
    %500 = vst [vmem:[#allocation2 + $0x68] sm:$0xff] %v468
    %501 = vst [vmem:[#allocation2 + $0x70] sm:$0xff] %v469
    %502 = vst [vmem:[#allocation2 + $0x78] sm:$0xff] %v470
    %503 = vst [vmem:[#allocation2 + $0x80] sm:$0xff] %v471
    %504 = vst [vmem:[#allocation2 + $0x88] sm:$0xff] %v472
    %505 = vst [vmem:[#allocation2 + $0x90] sm:$0xff] %v473
    %506 = vst [vmem:[#allocation2 + $0x98] sm:$0xff] %v474
    %507 = vst [vmem:[#allocation2 + $0xa0] sm:$0xff] %v475
    %508 = vst [vmem:[#allocation2 + $0xa8] sm:$0xff] %v476
    %509 = vst [vmem:[#allocation2 + $0xb0] sm:$0xff] %v477
    %510 = vst [vmem:[#allocation2 + $0xb8] sm:$0xff] %v478
    %511 = vst [vmem:[#allocation2 + $0xc0] sm:$0xff] %v479
    %512 = vst [vmem:[#allocation2 + $0xc8] sm:$0xff] %v480
    %513 = vst [vmem:[#allocation2 + $0xd0] sm:$0xff] %v481
    %514 = vst [vmem:[#allocation2 + $0xd8] sm:$0xff] %v482
    %515 = vst [vmem:[#allocation2 + $0xe0] sm:$0xff] %v483
    %516 = vst [vmem:[#allocation2 + $0xe8] sm:$0xff] %v484
    %517 = vst [vmem:[#allocation2 + $0xf0] sm:$0xff] %v485
    %518 = vst [vmem:[#allocation2 + $0xf8] sm:$0xff] %v486
    // Predicated region
    $region34: #{tpu_custom_call.1} parent=1 // pred_check
      %p519 = pneg %p65
    $region35: #{tpu_custom_call.1} parent=1 // pred_check_branch
      %521 = sbr.rel (%p519) target = $region37
    $region36: #{tpu_custom_call.1} parent=1 // pred_region
      %v522 = vld [vmem:[#allocation2] sm:$0xff]
      %v523 = vld [vmem:[#allocation2 + $0x8] sm:$0xff]
      %v524 = vld [vmem:[#allocation2 + $0x10] sm:$0xff]
      %v525 = vld [vmem:[#allocation2 + $0x18] sm:$0xff]
      %v526 = vld [vmem:[#allocation2 + $0x20] sm:$0xff]
      %v527 = vld [vmem:[#allocation2 + $0x28] sm:$0xff]
      %v528 = vld [vmem:[#allocation2 + $0x30] sm:$0xff]
      %v529 = vld [vmem:[#allocation2 + $0x38] sm:$0xff]
      %v530 = vld [vmem:[#allocation2 + $0x40] sm:$0xff]
      %v531 = vld [vmem:[#allocation2 + $0x48] sm:$0xff]
      %v532 = vld [vmem:[#allocation2 + $0x50] sm:$0xff]
      %v533 = vld [vmem:[#allocation2 + $0x58] sm:$0xff]
      %v534 = vld [vmem:[#allocation2 + $0x60] sm:$0xff]
      %v535 = vld [vmem:[#allocation2 + $0x68] sm:$0xff]
      %v536 = vld [vmem:[#allocation2 + $0x70] sm:$0xff]
      %v537 = vld [vmem:[#allocation2 + $0x78] sm:$0xff]
      %v538 = vld [vmem:[#allocation2 + $0x80] sm:$0xff]
      %v539 = vld [vmem:[#allocation2 + $0x88] sm:$0xff]
      %v540 = vld [vmem:[#allocation2 + $0x90] sm:$0xff]
      %v541 = vld [vmem:[#allocation2 + $0x98] sm:$0xff]
      %v542 = vld [vmem:[#allocation2 + $0xa0] sm:$0xff]
      %v543 = vld [vmem:[#allocation2 + $0xa8] sm:$0xff]
      %v544 = vld [vmem:[#allocation2 + $0xb0] sm:$0xff]
      %v545 = vld [vmem:[#allocation2 + $0xb8] sm:$0xff]
      %v546 = vld [vmem:[#allocation2 + $0xc0] sm:$0xff]
      %v547 = vld [vmem:[#allocation2 + $0xc8] sm:$0xff]
      %v548 = vld [vmem:[#allocation2 + $0xd0] sm:$0xff]
      %v549 = vld [vmem:[#allocation2 + $0xd8] sm:$0xff]
      %v550 = vld [vmem:[#allocation2 + $0xe0] sm:$0xff]
      %v551 = vld [vmem:[#allocation2 + $0xe8] sm:$0xff]
      %v552 = vld [vmem:[#allocation2 + $0xf0] sm:$0xff]
      %v553 = vld [vmem:[#allocation2 + $0xf8] sm:$0xff]
      %v554 = vld [vmem:[#allocation8] sm:$0xff]
      %v555 = vld [vmem:[#allocation8 + $0x8] sm:$0xff]
      %v556 = vld [vmem:[#allocation8 + $0x10] sm:$0xff]
      %v557 = vld [vmem:[#allocation8 + $0x18] sm:$0xff]
      %v558 = vld [vmem:[#allocation8 + $0x20] sm:$0xff]
      %v559 = vld [vmem:[#allocation8 + $0x28] sm:$0xff]
      %v560 = vld [vmem:[#allocation8 + $0x30] sm:$0xff]
      %v561 = vld [vmem:[#allocation8 + $0x38] sm:$0xff]
      %v562 = vld [vmem:[#allocation8 + $0x40] sm:$0xff]
      %v563 = vld [vmem:[#allocation8 + $0x48] sm:$0xff]
      %v564 = vld [vmem:[#allocation8 + $0x50] sm:$0xff]
      %v565 = vld [vmem:[#allocation8 + $0x58] sm:$0xff]
      %v566 = vld [vmem:[#allocation8 + $0x60] sm:$0xff]
      %v567 = vld [vmem:[#allocation8 + $0x68] sm:$0xff]
      %v568 = vld [vmem:[#allocation8 + $0x70] sm:$0xff]
      %v569 = vld [vmem:[#allocation8 + $0x78] sm:$0xff]
      %v570 = vld [vmem:[%s3] sm:$0x1]
      %v572 = vperm.slane %v570, 0
      %574 = vmatpush.msra.mxu0 %v569
      %575 = vmatpush.msra.mxu0 %v568
      %576 = vmatpush.msra.mxu0 %v567
      %577 = vmatpush.msra.mxu0 %v566
      %578 = vmatpush.msra.mxu0 %v565
      %579 = vmatpush.msra.mxu0 %v564
      %580 = vmatpush.msra.mxu0 %v563
      %581 = vmatpush.msra.mxu0 %v562
      %582 = vmatpush.msra.mxu0 %v561
      %583 = vmatpush.msra.mxu0 %v560
      %584 = vmatpush.msra.mxu0 %v559
      %585 = vmatpush.msra.mxu0 %v558
      %586 = vmatpush.msra.mxu0 %v557
      %587 = vmatpush.msra.mxu0 %v556
      %588 = vmatpush.msra.mxu0 %v555
      %589 = vmatpush.msra.mxu0 %v554
      %590 = vmatmul.f32.gmra.mxu0 %v522
      %v591 = vpop.f32.mrf.mxu0
      %v592 = vadd.f32 %v572, %v591
      %593 = vmatmul.f32.gmra.mxu0 %v523
      %v594 = vpop.f32.mrf.mxu0
      %v595 = vadd.f32 %v572, %v594
      %596 = vmatmul.f32.gmra.mxu0 %v524
      %v597 = vpop.f32.mrf.mxu0
      %v598 = vadd.f32 %v572, %v597
      %599 = vmatmul.f32.gmra.mxu0 %v525
      %v600 = vpop.f32.mrf.mxu0
      %v601 = vadd.f32 %v572, %v600
      %602 = vmatmul.f32.gmra.mxu0 %v526
      %v603 = vpop.f32.mrf.mxu0
      %v604 = vadd.f32 %v572, %v603
      %605 = vmatmul.f32.gmra.mxu0 %v527
      %v606 = vpop.f32.mrf.mxu0
      %v607 = vadd.f32 %v572, %v606
      %608 = vmatmul.f32.gmra.mxu0 %v528
      %v609 = vpop.f32.mrf.mxu0
      %v610 = vadd.f32 %v572, %v609
      %611 = vmatmul.f32.gmra.mxu0 %v529
      %v612 = vpop.f32.mrf.mxu0
      %v613 = vadd.f32 %v572, %v612
      %614 = vmatmul.f32.gmra.mxu0 %v530
      %v615 = vpop.f32.mrf.mxu0
      %v616 = vadd.f32 %v572, %v615
      %617 = vmatmul.f32.gmra.mxu0 %v531
      %v618 = vpop.f32.mrf.mxu0
      %v619 = vadd.f32 %v572, %v618
      %620 = vmatmul.f32.gmra.mxu0 %v532
      %v621 = vpop.f32.mrf.mxu0
      %v622 = vadd.f32 %v572, %v621
      %623 = vmatmul.f32.gmra.mxu0 %v533
      %v624 = vpop.f32.mrf.mxu0
      %v625 = vadd.f32 %v572, %v624
      %626 = vmatmul.f32.gmra.mxu0 %v534
      %v627 = vpop.f32.mrf.mxu0
      %v628 = vadd.f32 %v572, %v627
      %629 = vmatmul.f32.gmra.mxu0 %v535
      %v630 = vpop.f32.mrf.mxu0
      %v631 = vadd.f32 %v572, %v630
      %632 = vmatmul.f32.gmra.mxu0 %v536
      %v633 = vpop.f32.mrf.mxu0
      %v634 = vadd.f32 %v572, %v633
      %635 = vmatmul.f32.gmra.mxu0 %v537
      %v636 = vpop.f32.mrf.mxu0
      %v637 = vadd.f32 %v572, %v636
      %638 = vmatmul.f32.gmra.mxu0 %v538
      %v639 = vpop.f32.mrf.mxu0
      %v640 = vadd.f32 %v572, %v639
      %641 = vmatmul.f32.gmra.mxu0 %v539
      %v642 = vpop.f32.mrf.mxu0
      %v643 = vadd.f32 %v572, %v642
      %644 = vmatmul.f32.gmra.mxu0 %v540
      %v645 = vpop.f32.mrf.mxu0
      %v646 = vadd.f32 %v572, %v645
      %647 = vmatmul.f32.gmra.mxu0 %v541
      %v648 = vpop.f32.mrf.mxu0
      %v649 = vadd.f32 %v572, %v648
      %650 = vmatmul.f32.gmra.mxu0 %v542
      %v651 = vpop.f32.mrf.mxu0
      %v652 = vadd.f32 %v572, %v651
      %653 = vmatmul.f32.gmra.mxu0 %v543
      %v654 = vpop.f32.mrf.mxu0
      %v655 = vadd.f32 %v572, %v654
      %656 = vmatmul.f32.gmra.mxu0 %v544
      %v657 = vpop.f32.mrf.mxu0
      %v658 = vadd.f32 %v572, %v657
      %659 = vmatmul.f32.gmra.mxu0 %v545
      %v660 = vpop.f32.mrf.mxu0
      %v661 = vadd.f32 %v572, %v660
      %662 = vmatmul.f32.gmra.mxu0 %v546
      %v663 = vpop.f32.mrf.mxu0
      %v664 = vadd.f32 %v572, %v663
      %665 = vmatmul.f32.gmra.mxu0 %v547
      %v666 = vpop.f32.mrf.mxu0
      %v667 = vadd.f32 %v572, %v666
      %668 = vmatmul.f32.gmra.mxu0 %v548
      %v669 = vpop.f32.mrf.mxu0
      %v670 = vadd.f32 %v572, %v669
      %671 = vmatmul.f32.gmra.mxu0 %v549
      %v672 = vpop.f32.mrf.mxu0
      %v673 = vadd.f32 %v572, %v672
      %674 = vmatmul.f32.gmra.mxu0 %v550
      %v675 = vpop.f32.mrf.mxu0
      %v676 = vadd.f32 %v572, %v675
      %677 = vmatmul.f32.gmra.mxu0 %v551
      %v678 = vpop.f32.mrf.mxu0
      %v679 = vadd.f32 %v572, %v678
      %680 = vmatmul.f32.gmra.mxu0 %v552
      %v681 = vpop.f32.mrf.mxu0
      %v682 = vadd.f32 %v572, %v681
      %683 = vmatmul.f32.gmra.mxu0 %v553
      %v684 = vpop.f32.mrf.mxu0
      %v685 = vadd.f32 %v572, %v684
      %686 = vdwg.mxu0
      %687 = vst [vmem:[#allocation9] sm:$0xff] %v592
      %688 = vst [vmem:[#allocation9 + $0x8] sm:$0xff] %v595
      %689 = vst [vmem:[#allocation9 + $0x10] sm:$0xff] %v598
      %690 = vst [vmem:[#allocation9 + $0x18] sm:$0xff] %v601
      %691 = vst [vmem:[#allocation9 + $0x20] sm:$0xff] %v604
      %692 = vst [vmem:[#allocation9 + $0x28] sm:$0xff] %v607
      %693 = vst [vmem:[#allocation9 + $0x30] sm:$0xff] %v610
      %694 = vst [vmem:[#allocation9 + $0x38] sm:$0xff] %v613
      %695 = vst [vmem:[#allocation9 + $0x40] sm:$0xff] %v616
      %696 = vst [vmem:[#allocation9 + $0x48] sm:$0xff] %v619
      %697 = vst [vmem:[#allocation9 + $0x50] sm:$0xff] %v622
      %698 = vst [vmem:[#allocation9 + $0x58] sm:$0xff] %v625
      %699 = vst [vmem:[#allocation9 + $0x60] sm:$0xff] %v628
      %700 = vst [vmem:[#allocation9 + $0x68] sm:$0xff] %v631
      %701 = vst [vmem:[#allocation9 + $0x70] sm:$0xff] %v634
      %702 = vst [vmem:[#allocation9 + $0x78] sm:$0xff] %v637
      %703 = vst [vmem:[#allocation9 + $0x80] sm:$0xff] %v640
      %704 = vst [vmem:[#allocation9 + $0x88] sm:$0xff] %v643
      %705 = vst [vmem:[#allocation9 + $0x90] sm:$0xff] %v646
      %706 = vst [vmem:[#allocation9 + $0x98] sm:$0xff] %v649
      %707 = vst [vmem:[#allocation9 + $0xa0] sm:$0xff] %v652
      %708 = vst [vmem:[#allocation9 + $0xa8] sm:$0xff] %v655
      %709 = vst [vmem:[#allocation9 + $0xb0] sm:$0xff] %v658
      %710 = vst [vmem:[#allocation9 + $0xb8] sm:$0xff] %v661
      %711 = vst [vmem:[#allocation9 + $0xc0] sm:$0xff] %v664
      %712 = vst [vmem:[#allocation9 + $0xc8] sm:$0xff] %v667
      %713 = vst [vmem:[#allocation9 + $0xd0] sm:$0xff] %v670
      %714 = vst [vmem:[#allocation9 + $0xd8] sm:$0xff] %v673
      %715 = vst [vmem:[#allocation9 + $0xe0] sm:$0xff] %v676
      %716 = vst [vmem:[#allocation9 + $0xe8] sm:$0xff] %v679
      %717 = vst [vmem:[#allocation9 + $0xf0] sm:$0xff] %v682
      %718 = vst [vmem:[#allocation9 + $0xf8] sm:$0xff] %v685
    $region37: #{tpu_custom_call.1} parent=1 // pred_fallthru
      _
    // Predicated region
    $region38: #{tpu_custom_call.1} parent=1 // pred_check
      _
    $region39: #{tpu_custom_call.1} parent=1 // pred_check_branch
      %720 = sbr.rel (0) target = $region41
    $region40: #{tpu_custom_call.1} parent=1 // pred_region
      %722 = vsyncadd [#allocation5], 0
      %s723 = sshll.u32 [#allocation9], 4
      %s724 = int_to_ptr.vmem [resolvable:$true] %s723
      %s725 = sshll.u32 %s4, 4
      %s726 = int_to_ptr.hbm [resolvable:$true] %s725
      %731 = dma.vmem_to_hbm [thread:$0]  %s724, 4096, %s726, [#allocation5], 128, 128, 8
    $region41: #{tpu_custom_call.1} parent=1 // pred_fallthru
      _
    // Predicated region
    $region42: #{tpu_custom_call.1} parent=1 // pred_check
      _
    $region43: #{tpu_custom_call.1} parent=1 // pred_check_branch
      %733 = sbr.rel (0) target = $region45
    $region44: #{tpu_custom_call.1} parent=1 // pred_region
      %735 = dma.done [#allocation5], 4096
    $region45: #{tpu_custom_call.1} parent=1 // pred_fallthru
      _
    %736 = vsyncpa [#allocation4], 1
    %737 = vsyncpa [#allocation7], 1
    %738 = vsyncpa [#allocation5], 1

</llo_original>
